<compile_context>
chip_gen: v7x
topology: tpu7x:2x2x1
jax: 0.10.0
libtpu: 0.0.40
codegen_flags: <defaults>
</compile_context>

<pallas_src>
import math
import functools

import jax
import jax.numpy as jnp
from jax.experimental import pallas as pl
from jax.experimental.pallas import tpu as pltpu


# ---------------- activation math (runs inside the kernel) ----------------

def _apply_activation(x, hidden_act: str):
    act = hidden_act.lower()
    one = jnp.asarray(1.0, x.dtype)
    half = jnp.asarray(0.5, x.dtype)
    if act == "relu":
        return jnp.maximum(x, jnp.asarray(0.0, x.dtype))
    elif act == "tanh":
        return jnp.tanh(x)
    elif act == "swish":
        # sigmoid -> EUP path (free slot in a mem-bound kernel)
        return x * jax.nn.sigmoid(x)
    elif act == "gelu":
        # gelu_new (BERT/GPT tanh approximation) -- matches the PyTorch reference
        c = jnp.asarray(math.sqrt(2.0 / math.pi), x.dtype)
        k = jnp.asarray(0.044715, x.dtype)
        return half * x * (one + jnp.tanh(c * (x + k * (x * x * x))))
    elif act == "gelu_orig":
        # exact erf-based gelu (torch.nn.functional.gelu default).
        # TODO(synk): if a v7x bundle dump shows erf lowering to a long VALU
        # polynomial (VALU-bound), consider the tanh-approx path on v7x only.
        inv_sqrt2 = jnp.asarray(1.0 / math.sqrt(2.0), x.dtype)
        return half * x * (one + jax.lax.erf(x * inv_sqrt2))
    elif act == "leakyrelu":
        # torch default negative_slope = 0.01
        return jnp.where(x >= 0, x, jnp.asarray(0.01, x.dtype) * x)
    else:
        raise NotImplementedError(f"hidden_act '{hidden_act}' not supported in this kernel")


_TRANSCENDENTAL_ACTS = {"tanh", "swish", "gelu", "gelu_orig"}


# ---------------- Pallas kernel ----------------

def _activation_kernel(x_ref, o_ref, *, hidden_act: str, compute_dtype):
    x = x_ref[...].astype(compute_dtype)
    y = _apply_activation(x, hidden_act)
    o_ref[...] = y.astype(o_ref.dtype)


# ---------------- helpers ----------------

def _round_up(n: int, m: int) -> int:
    return ((n + m - 1) // m) * m


def _round_down(n: int, m: int) -> int:
    return (n // m) * m


def _tpu_generation():
    """Best-effort TPU generation from the device kind string; None if unknown."""
    try:
        kind = jax.devices()[0].device_kind.lower()
    except Exception:
        return None
    for gen, tags in ((7, ("v7", "7x")), (6, ("v6",)), (5, ("v5",)),
                      (4, ("v4",)), (3, ("v3",)), (2, ("v2",))):
        if any(t in kind for t in tags):
            return gen
    return None


def _chip_config(gen):
    """(target_block_bytes, vmem_limit_bytes_or_None, ensure_two_grid_steps)."""
    if gen in (5, 6):
        # 128 MiB physical VMEM, 1 TensorCore: big blocks, raise scoped limit.
        return 8 * 1024 * 1024, 64 * 1024 * 1024, False
    if gen == 7:
        # 64 MiB physical VMEM, 2 TensorCores: cap blocks + limit, feed both TCs.
        return 4 * 1024 * 1024, 48 * 1024 * 1024, True
    # Unknown / older chips: conservative 2 MiB blocks, default scoped VMEM.
    return 2 * 1024 * 1024, None, True


# ---------------- wrapper ----------------

def activation_function(x, hidden_act: str = "gelu"):
    """Elementwise activation; works for any input shape/dtype."""
    orig_shape = x.shape
    n_elems = math.prod(orig_shape) if orig_shape else 1
    if n_elems == 0:
        return x

    itemsize = jnp.dtype(x.dtype).itemsize
    sublane = {4: 8, 2: 16, 1: 32}.get(itemsize, 8)

    gen = _tpu_generation()
    target_block_bytes, vmem_limit, want_two_steps = _chip_config(gen)

    # ---- lane-dense flat layout: (rows, lane), avoid pad whenever possible ----
    lane = None
    for cand in (1024, 512, 256, 128):
        if n_elems % cand == 0:
            lane = cand
            break

    x_flat = x.reshape(-1)
    if lane is not None:
        pad = 0
        rows = n_elems // lane
    else:
        # Ragged size: single pad (and unpad) fallback.
        lane = 128
        rows = _round_up(pl.cdiv(n_elems, lane), sublane)
        pad = rows * lane - n_elems
        x_flat = jnp.pad(x_flat, (0, pad))
    x2d = x_flat.reshape(rows, lane)

    # ---- row tile: target block_bytes, sublane-aligned, >=2 grid steps on v7x ----
    row_tile_target = max(sublane,
                          _round_down(target_block_bytes // (lane * itemsize), sublane))
    if rows < 2 * sublane:
        row_tile = rows  # full-extent block (allowed even if < sublane)
    else:
        row_tile = min(row_tile_target, _round_down(rows, sublane))
        if want_two_steps:
            half = max(_round_down(rows // 2, sublane), sublane)
            row_tile = min(row_tile, half)
        row_tile = max(row_tile, sublane)

    grid = (pl.cdiv(rows, row_tile),)  # partial last block handled by Pallas masking

    # bf16 computes natively only on v6e/v7x (bf16 VPU/EUP); otherwise f32.
    if x.dtype == jnp.bfloat16 and gen is not None and gen >= 6:
        compute_dtype = jnp.bfloat16
    else:
        compute_dtype = jnp.float32

    kernel = functools.partial(
        _activation_kernel, hidden_act=hidden_act, compute_dtype=compute_dtype
    )

    total = rows * lane
    n_trans = total if hidden_act.lower() in _TRANSCENDENTAL_ACTS else 0
    cost = pl.CostEstimate(
        flops=8 * total,
        transcendentals=n_trans,
        bytes_accessed=2 * total * itemsize,
    )

    cp_kwargs = dict(dimension_semantics=("parallel",))
    if vmem_limit is not None:
        cp_kwargs["vmem_limit_bytes"] = vmem_limit

    out2d = pl.pallas_call(
        kernel,
        out_shape=jax.ShapeDtypeStruct((rows, lane), x.dtype),
        grid_spec=pltpu.PrefetchScalarGridSpec(
            num_scalar_prefetch=0,
            grid=grid,
            in_specs=[pl.BlockSpec((row_tile, lane), lambda i: (i, 0))],
            out_specs=pl.BlockSpec((row_tile, lane), lambda i: (i, 0)),
        ),
        compiler_params=pltpu.CompilerParams(**cp_kwargs),
        cost_estimate=cost,
    )(x2d)

    out_flat = out2d.reshape(-1)
    if pad:
        out_flat = out_flat[:n_elems]
    return out_flat.reshape(orig_shape)


# ---------------- reference (pure JAX) ----------------

def _ref(x, hidden_act):
    y = _apply_activation(x.astype(jnp.float32), hidden_act)
    return y.astype(x.dtype)


if __name__ == "__main__":
    key = jax.random.PRNGKey(0)
    k1, k2, k3 = jax.random.split(key, 3)

    ok = True
    acts = ["relu", "tanh", "swish", "gelu", "gelu_orig", "leakyrelu"]

    # Small aligned shape (lane-divisible path, single full-extent block).
    x_small = jax.random.normal(k1, (2, 8, 32), dtype=jnp.float32)
    # Ragged shape (pad fallback path).
    x_ragged = jax.random.normal(k2, (2, 8, 33), dtype=jnp.float32)
    # Larger shape exercising a multi-step grid (lane=1024).
    x_big = jax.random.normal(k3, (4, 128, 768), dtype=jnp.float32)

    for name, xin in (("small", x_small), ("ragged", x_ragged), ("big", x_big)):
        for act in acts:
            y = activation_function(xin, act)
            jax.block_until_ready(y)
            y_ref = _ref(xin, act)
            if not jnp.allclose(y, y_ref, atol=1e-5, rtol=1e-5):
                ok = False
                err = jnp.max(jnp.abs(y - y_ref))
                print(f"MISMATCH [{name}/{act}]: max abs err = {err}")

    # bf16 path (native on v6e/v7x, f32 compute elsewhere) -- loose tolerance.
    x_bf16 = jax.random.normal(k1, (2, 8, 32), dtype=jnp.bfloat16)
    y = activation_function(x_bf16, "gelu")
    jax.block_until_ready(y)
    y_ref = _ref(x_bf16, "gelu")
    if not jnp.allclose(y.astype(jnp.float32), y_ref.astype(jnp.float32),
                        atol=2e-2, rtol=2e-2):
        ok = False
        err = jnp.max(jnp.abs(y.astype(jnp.float32) - y_ref.astype(jnp.float32)))
        print(f"MISMATCH [bf16/gelu]: max abs err = {err}")

    if ok:
        print("KERNEL_OK")
</pallas_src>

<mosaic_0001>
module attributes {stable_mosaic.version = 11 : i64} {
  func.func @_activation_kernel(%arg0: i32, %arg1: memref<1x512xf32, #tpu.memory_space<vmem>>, %arg2: memref<1x512xf32, #tpu.memory_space<vmem>>) attributes {dimension_semantics = [#tpu.dimension_semantics<parallel>], iteration_bounds = array<i64: 1>, scalar_prefetch = 0 : i64, scratch_operands = 0 : i64, tpu.core_type = #tpu.core_type<tc>, window_params = [{transform_indices = @transform_0, window_bounds = array<i64: 1, 512>}, {transform_indices = @transform_1, window_bounds = array<i64: 1, 512>}]} {
    %c0 = arith.constant 0 : index
    %c0_0 = arith.constant 0 : index
    %0 = vector.load %arg1[%c0, %c0_0] : memref<1x512xf32, #tpu.memory_space<vmem>>, vector<1x512xf32>
    %cst = arith.constant 0.000000e+00 : f32
    %1 = vector.broadcast %cst : f32 to vector<1x512xf32>
    %2 = arith.maximumf %0, %1 : vector<1x512xf32>
    %c0_1 = arith.constant 0 : index
    %c0_2 = arith.constant 0 : index
    %3 = vector.load %arg2[%c0_1, %c0_2] : memref<1x512xf32, #tpu.memory_space<vmem>>, vector<1x512xf32>
    tpu.vector_store %arg2[%c0_1, %c0_2], %2 {strides = array<i32>} : memref<1x512xf32, #tpu.memory_space<vmem>>, vector<1x512xf32>,
    return
  }
  func.func @transform_0(%arg0: i32) -> (i32, i32) {
    %c0_i32 = arith.constant 0 : i32
    %c0_i32_0 = arith.constant 0 : i32
    return %arg0, %c0_i32 : i32, i32
  }
  func.func @transform_1(%arg0: i32) -> (i32, i32) {
    %c0_i32 = arith.constant 0 : i32
    %c0_i32_0 = arith.constant 0 : i32
    return %arg0, %c0_i32 : i32, i32
  }
}

</mosaic_0001>

<llo_original>
// kernel: tpu_custom_call.1
$region0: #{tpu_custom_call.1}
  #allocation0 [shape = 'u32[]', space=smem, size = 0x4, offset = 0x4, fixed_abs, tag = 'smem constant byte address 0x4 - core index']
  #allocation1 [shape = 'u32[144,128]{1,0:T(1,128)}', space=vmem, size = 0x12000, scoped, tag = 'internal scratch']
  %s0 = inlined_call_operand.hbm [shape: f32[1,512], index: 0, kind: input, shape index: {}]
  %s1 = inlined_call_operand.hbm [shape: f32[1,512], index: 1, kind: output, shape index: {}]
  %s2 = sld [smem:[#allocation0]]
  $region18: #{tpu_custom_call.1} parent=0
    _
  %s4 = ssub.s32 1, %s2
  %s5 = scalar_select 0, %s4, %s2
  $region1: #{tpu_custom_call.1} parent=0
    #allocation2 [shape = 'u8[2048]{0}', space=vmem, size = 0x800, scoped, tag = 'input window, operand 0, single buffered']
    #allocation3 [shape = 's32[1]{0}', space=sflag, size = 0x4, scoped, tag = 'scoped memory for tpu_custom_call.1']
    #allocation4 [shape = 's32[1]{0}', space=sflag, size = 0x4, scoped, tag = 'scoped memory for tpu_custom_call.1']
    #allocation5 [shape = 'u8[2048]{0}', space=vmem, size = 0x800, scoped, tag = 'output window, operand 0, single buffered']
    %6 = vsyncpa [#allocation3], 0
    %7 = vsyncpa [#allocation4], 0
    // Predicated region
    $region2: #{tpu_custom_call.1} parent=1 // pred_check
      _
    $region3: #{tpu_custom_call.1} parent=1 // pred_check_branch
      %9 = sbr.rel (0) target = $region5
    $region4: #{tpu_custom_call.1} parent=1 // pred_region
      %s11 = ssub.s32 64, 64
      %12 = vsyncadd [#allocation3], %s11
      %s14 = sshll.u32 [#allocation2], 4
      %s15 = int_to_ptr.vmem [resolvable:$true] %s14
      %17 = dma.hbm_to_vmem [thread:$0]  %s0, 64, %s15, [#allocation3]
    $region5: #{tpu_custom_call.1} parent=1 // pred_fallthru
      _
    // Predicated region
    $region6: #{tpu_custom_call.1} parent=1 // pred_check
      _
    $region7: #{tpu_custom_call.1} parent=1 // pred_check_branch
      %19 = sbr.rel (0) target = $region9
    $region8: #{tpu_custom_call.1} parent=1 // pred_region
      %20 = dma.done [#allocation3], 64
    $region9: #{tpu_custom_call.1} parent=1 // pred_fallthru
      _
    %v21 = vld [vmem:[#allocation2] sm:$0xf]
    %v22 = vmax.f32 %v21, 0.0
    %v23 = vlaneseq
    %vm24 = vcmp.ge.s32.totalorder %v23, 0
    %vm25 = vcmp.lt.s32.totalorder %v23, 512
    %vm26 = vmand %vm24, %vm25
    %27 = vst.msk [vmem:[#allocation5] sm:$0xf] %vm26, %v22
    // Predicated region
    $region10: #{tpu_custom_call.1} parent=1 // pred_check
      _
    $region11: #{tpu_custom_call.1} parent=1 // pred_check_branch
      %29 = sbr.rel (0) target = $region13
    $region12: #{tpu_custom_call.1} parent=1 // pred_region
      %s31 = ssub.s32 64, 64
      %32 = vsyncadd [#allocation4], %s31
      %s34 = sshll.u32 [#allocation5], 4
      %s35 = int_to_ptr.vmem [resolvable:$true] %s34
      %37 = dma.vmem_to_hbm [thread:$0]  %s35, 64, %s1, [#allocation4]
    $region13: #{tpu_custom_call.1} parent=1 // pred_fallthru
      _
    // Predicated region
    $region14: #{tpu_custom_call.1} parent=1 // pred_check
      _
    $region15: #{tpu_custom_call.1} parent=1 // pred_check_branch
      %39 = sbr.rel (0) target = $region17
    $region16: #{tpu_custom_call.1} parent=1 // pred_region
      %40 = dma.done [#allocation4], 64
    $region17: #{tpu_custom_call.1} parent=1 // pred_fallthru
      _
    %41 = vsyncpa [#allocation3], 1
    %42 = vsyncpa [#allocation4], 1

</llo_original>
